<compile_context>
chip_gen: v5e
topology: v5e:2x2
jax: 0.10.0
libtpu: 0.0.40
codegen_flags: <defaults>
</compile_context>

<pallas_src>
import jax
import jax.numpy as jnp
from jax.experimental import pallas as pl
from jax.experimental.pallas import tpu as pltpu

_EPS = 1e-12                  # matches torch.nn.functional.normalize eps
_VMEM_BUDGET = 20 * (1 << 20)  # conservative per-call VMEM budget (bytes)
_VMEM_LIMIT = 32 * (1 << 20)   # scoped-VMEM limit handed to Mosaic


def _seghead_kernel(feats_ref, ct_ref, out_ref):
    # feats_ref: (tm, C)      raw feature rows (native dtype)
    # ct_ref:    (C, K_pad)   pre-normalized, pre-transposed cluster matrix
    # out_ref:   (tm, K_pad)  logits tile
    feats = feats_ref[...]

    # Row L2 normalization: reduce in f32, scale in the native dtype.
    # rsqrt(max(sumsq, eps^2)) == 1 / max(norm, eps)  (torch semantics).
    sumsq = jnp.sum(jnp.square(feats.astype(jnp.float32)), axis=-1, keepdims=True)
    inv = jax.lax.rsqrt(jnp.maximum(sumsq, _EPS * _EPS))
    f = (feats * inv.astype(feats.dtype)).astype(ct_ref.dtype)

    # logits tile = normed_features @ normed_clusters.T  (MXU, f32 accumulate).
    out_ref[...] = jnp.dot(
        f, ct_ref[...], preferred_element_type=jnp.float32
    ).astype(out_ref.dtype)


def seghead_forward(feats, cluster, *, tm=None, mxu_bf16=None):
    """feats: (N, C), cluster: (K, C) -> logits (N, K), dtype = feats.dtype."""
    N, C = feats.shape
    K, C2 = cluster.shape
    assert C == C2, "feature / cluster channel mismatch"

    in_bytes = jnp.dtype(feats.dtype).itemsize
    align = 8 if in_bytes >= 4 else 16            # sublane granularity
    K_pad = pl.cdiv(K, 128) * 128                 # lane-dense output columns
    C_vmem = pl.cdiv(C, 128) * 128                # physical lane width in VMEM
    C_sub = pl.cdiv(C, 8) * 8

    # MXU operand dtype: bf16 for sub-f32 features (native MXU rate); keep f32
    # for f32 features unless explicitly overridden (v5e large-C: set True).
    if mxu_bf16 is None:
        mxu_bf16 = in_bytes < 4
    mxu_dtype = jnp.bfloat16 if mxu_bf16 else jnp.float32
    clus_bytes = jnp.dtype(mxu_dtype).itemsize

    # --- one-time cluster prep in the wrapper (hoisted out of the kernel) ---
    c32 = cluster.astype(jnp.float32)
    c_norm = jnp.sqrt(jnp.sum(c32 * c32, axis=1, keepdims=True))
    c_normed = c32 / jnp.maximum(c_norm, _EPS)                # (K, C)
    c_t = jnp.transpose(c_normed)                             # (C, K)
    if K_pad != K:
        c_t = jnp.pad(c_t, ((0, 0), (0, K_pad - K)))          # zero cols -> zero logits
    c_t = c_t.astype(mxu_dtype)

    # --- row-tile sizing -----------------------------------------------------
    def _vmem_bytes(t):
        feats_buf = t * C_vmem * in_bytes          # double-buffered input tile
        out_buf = t * K_pad * in_bytes             # double-buffered output tile
        clus_buf = C_sub * K_pad * clus_bytes      # resident cluster (x2 buffers)
        scratch = t * C_vmem * 4 + t * K_pad * 4   # in-kernel f32 temporaries
        return 2 * feats_buf + 2 * out_buf + 2 * clus_buf + scratch

    if tm is None:
        # target ~2 MiB feats buffers so per-step overhead is amortized
        tm = max(1024, (2 << 20) // max(C_vmem * in_bytes, 1))
    tm_eff = pl.cdiv(max(int(tm), align), align) * align
    tm_eff = min(tm_eff, pl.cdiv(N, align) * align)
    if N >= 2 * align:
        # ensure >= 2 grid steps so both v7x TensorCores get work
        tm_eff = min(tm_eff, pl.cdiv(pl.cdiv(N, 2), align) * align)
    while tm_eff > align and _vmem_bytes(tm_eff) > _VMEM_BUDGET:
        tm_eff = max(align, pl.cdiv(tm_eff // 2, align) * align)

    grid = (pl.cdiv(N, tm_eff),)                   # partial last block handled by Pallas

    cost = pl.CostEstimate(
        flops=2 * N * C * K_pad,
        bytes_accessed=N * C * in_bytes + N * K_pad * in_bytes + C * K_pad * clus_bytes,
        transcendentals=N,
    )

    out = pl.pallas_call(
        _seghead_kernel,
        out_shape=jax.ShapeDtypeStruct((N, K_pad), feats.dtype),
        grid_spec=pltpu.PrefetchScalarGridSpec(
            num_scalar_prefetch=0,
            grid=grid,
            in_specs=[
                pl.BlockSpec((tm_eff, C), lambda i: (i, 0)),    # feats row tile
                pl.BlockSpec((C, K_pad), lambda i: (0, 0)),     # cluster (resident)
            ],
            out_specs=pl.BlockSpec((tm_eff, K_pad), lambda i: (i, 0)),
        ),
        compiler_params=pltpu.CompilerParams(
            dimension_semantics=("parallel",),   # shards grid steps across TCs on v7x
            vmem_limit_bytes=_VMEM_LIMIT,
        ),
        cost_estimate=cost,
    )(feats, c_t)

    # Only the cheap column slice remains (fuses into the consumer under jit).
    return out[:, :K]


def _reference(feats, cluster):
    f32 = feats.astype(jnp.float32)
    c32 = cluster.astype(jnp.float32)
    f = f32 / jnp.maximum(jnp.linalg.norm(f32, axis=1, keepdims=True), _EPS)
    c = c32 / jnp.maximum(jnp.linalg.norm(c32, axis=1, keepdims=True), _EPS)
    return f @ c.T


if __name__ == "__main__":
    key = jax.random.PRNGKey(0)
    k1, k2, k3, k4 = jax.random.split(key, 4)

    # --- Test 1: module-default channels (C=128, K=20), small N, f32 --------
    # Tolerance allows for the TPU MXU's default f32 matmul precision.
    N, C, K = 16, 128, 20
    feats = jax.random.normal(k1, (N, C), dtype=jnp.float32)
    cluster = jax.random.normal(k2, (K, C), dtype=jnp.float32)

    logits = jax.block_until_ready(seghead_forward(feats, cluster))
    ref = _reference(feats, cluster)
    assert logits.shape == (N, K)
    assert jnp.allclose(logits, ref, atol=1e-2, rtol=1e-2)

    # --- Test 2: tiled bf16 path; N not a multiple of the tile --------------
    # Exercises the grid, the partial last block, K-padding and the bf16 MXU.
    N2, C2, K2 = 1000, 128, 20
    feats2 = jax.random.normal(k3, (N2, C2), dtype=jnp.bfloat16)
    cluster2 = jax.random.normal(k4, (K2, C2), dtype=jnp.float32)

    logits2 = jax.block_until_ready(seghead_forward(feats2, cluster2, tm=256))
    ref2 = _reference(feats2, cluster2)
    assert logits2.shape == (N2, K2)
    assert jnp.allclose(logits2.astype(jnp.float32), ref2, atol=2e-2, rtol=2e-2)

    print("KERNEL_OK")
</pallas_src>

<mosaic_0001>
module attributes {stable_mosaic.version = 11 : i64} {
  func.func @_seghead_kernel(%arg0: i32, %arg1: memref<8x128xf32, #tpu.memory_space<vmem>>, %arg2: memref<128x128xf32, #tpu.memory_space<vmem>>, %arg3: memref<8x128xf32, #tpu.memory_space<vmem>>) attributes {dimension_semantics = [#tpu.dimension_semantics<parallel>], iteration_bounds = array<i64: 2>, scalar_prefetch = 0 : i64, scratch_operands = 0 : i64, tpu.core_type = #tpu.core_type<tc>, window_params = [{transform_indices = @transform_0, window_bounds = array<i64: 8, 128>}, {pipeline_mode = #tpu.pipeline_mode<synchronous>, transform_indices = @transform_1, window_bounds = array<i64: 128, 128>}, {transform_indices = @transform_2, window_bounds = array<i64: 8, 128>}]} {
    %c0 = arith.constant 0 : index
    %c0_0 = arith.constant 0 : index
    %0 = vector.load %arg1[%c0, %c0_0] : memref<8x128xf32, #tpu.memory_space<vmem>>, vector<8x128xf32>
    %1 = arith.mulf %0, %0 : vector<8x128xf32>
    %cst = arith.constant dense<0.000000e+00> : vector<8xf32>
    %2 = vector.multi_reduction <add>, %1, %cst [1] : vector<8x128xf32> to vector<8xf32>
    %3 = vector.shape_cast %2 : vector<8xf32> to vector<8x1xf32>
    %cst_1 = arith.constant 1.000000e-24 : f32
    %4 = vector.broadcast %cst_1 : f32 to vector<8x1xf32>
    %5 = arith.maximumf %3, %4 : vector<8x1xf32>
    %6 = math.rsqrt %5 : vector<8x1xf32>
    %7 = vector.broadcast %6 : vector<8x1xf32> to vector<8x128xf32>
    %8 = arith.mulf %0, %7 : vector<8x128xf32>
    %c0_2 = arith.constant 0 : index
    %c0_3 = arith.constant 0 : index
    %9 = vector.load %arg2[%c0_2, %c0_3] : memref<128x128xf32, #tpu.memory_space<vmem>>, vector<128x128xf32>
    %cst_4 = arith.constant dense<0.000000e+00> : vector<8x128xf32>
    %10 = tpu.matmul %8, %9, %cst_4 {dimension_numbers = #tpu.dot_dimension_numbers<[1], [0], [0], [1], [0, 0, 1, 1], [], []>} : vector<8x128xf32>, vector<128x128xf32>, vector<8x128xf32> -> vector<8x128xf32>
    %c0_5 = arith.constant 0 : index
    %c0_6 = arith.constant 0 : index
    %11 = vector.load %arg3[%c0_5, %c0_6] : memref<8x128xf32, #tpu.memory_space<vmem>>, vector<8x128xf32>
    tpu.vector_store %arg3[%c0_5, %c0_6], %10 {strides = array<i32>} : memref<8x128xf32, #tpu.memory_space<vmem>>, vector<8x128xf32>,
    return
  }
  func.func @transform_0(%arg0: i32) -> (i32, i32) {
    %c0_i32 = arith.constant 0 : i32
    %c0_i32_0 = arith.constant 0 : i32
    return %arg0, %c0_i32 : i32, i32
  }
  func.func @transform_1(%arg0: i32) -> (i32, i32) {
    %c0_i32 = arith.constant 0 : i32
    %c0_i32_0 = arith.constant 0 : i32
    %c0_i32_1 = arith.constant 0 : i32
    return %c0_i32, %c0_i32_0 : i32, i32
  }
  func.func @transform_2(%arg0: i32) -> (i32, i32) {
    %c0_i32 = arith.constant 0 : i32
    %c0_i32_0 = arith.constant 0 : i32
    return %arg0, %c0_i32 : i32, i32
  }
}

</mosaic_0001>

<llo_original>
// kernel: tpu_custom_call.1
$region0: #{tpu_custom_call.1}
  #allocation0 [shape = 'u32[]', space=smem, size = 0x4, offset = 0x4, fixed_abs, tag = 'smem constant byte address 0x4 - core index']
  #allocation1 [shape = 'u32[72,128]{1,0:T(1,128)}', space=vmem, size = 0x9000, scoped, tag = 'internal scratch']
  %s0 = inlined_call_operand.hbm [shape: f32[16,128], index: 0, kind: input, shape index: {}]
  %s1 = inlined_call_operand.hbm [shape: f32[128,128], index: 1, kind: input, shape index: {}]
  %s2 = inlined_call_operand.hbm [shape: f32[16,128], index: 2, kind: output, shape index: {}]
  %s3 = sld [smem:[#allocation0]]
  $region49: #{tpu_custom_call.1} parent=0
    _
  %s5 = ssub.s32 1, %s3
  %s6 = scalar_select 0, %s5, %s3
  $region1: #{tpu_custom_call.1} parent=0
    #allocation2 [shape = 'u8[8192]{0}', space=vmem, size = 0x2000, scoped, tag = 'input window, operand 0']
    #allocation3 [shape = 's32[2]{0}', space=sflag, size = 0x8, scoped, tag = 'scoped memory for tpu_custom_call.1']
    #allocation4 [shape = 's32[2]{0}', space=sflag, size = 0x8, scoped, tag = 'scoped memory for tpu_custom_call.1']
    #allocation5 [shape = 'u8[65536]{0}', space=vmem, size = 0x10000, scoped, tag = 'input window, operand 1, single buffered']
    #allocation6 [shape = 's32[1]{0}', space=sflag, size = 0x4, scoped, tag = 'scoped memory for tpu_custom_call.1']
    #allocation7 [shape = 'u8[8192]{0}', space=vmem, size = 0x2000, scoped, tag = 'output window, operand 0']
    %7 = vsyncpa [#allocation3], 0
    %s8 = scalar_lea.sflag [#allocation3], 1
    %9 = vsyncpa %s8, 0
    %10 = vsyncpa [#allocation6], 0
    %11 = vsyncpa [#allocation4], 0
    %s12 = scalar_lea.sflag [#allocation4], 1
    %13 = vsyncpa %s12, 0
    loop: start=0, step=1, limit=4
    $region2: #{tpu_custom_call.1} parent=1 // loop_pre_header
      _
    $region3: #{tpu_custom_call.1} parent=1 // loop_header
      %s15 = sphi 0, %s19
      %p16 = scmp.ge.s32.totalorder %s15, 4
      %s25 = sphi 0, %s27
      %s28 = sphi 0, %s25
      %s29 = sphi 0, %s28
      %s45 = sphi 0, %s29
      %s49 = sphi 0, %s49
      %s51 = sphi 0, %s49
      %s52 = sphi 0, %s51
      %s66 = sphi 0, %s52
      %s72 = sphi 0, %s74
      %s75 = sphi 0, %s72
      %s76 = sphi 0, %s75
      %s92 = sphi 0, %s76
    $region4: #{tpu_custom_call.1} parent=1 // loop_header_branch
      %18 = sbr.rel (%p16) target = $region8
    $region5: #{tpu_custom_call.1} parent=1 // loop_body
      %s20 = ssub.s32 %s15, 1
      %s21 = ssub.s32 %s15, 2
      %s22 = sadd.s32 %s15, 1
      %s23 = ssub.s32 %s15, %s22
      %p24 = scmp.eq.s32.totalorder %s23, 0
      %s26 = sadd.s32 %s25, 1
      %s27 = scalar_select %p24, %s25, %s26
      %p30 = pneg %p24
      %p31 = scmp.eq.s32.totalorder %s15, 1
      %p32 = por %p30, %p31
      %p33 = scmp.ne.s32.totalorder %s25, %s28
      %p34 = scmp.eq.s32.totalorder %s15, 0
      %p35 = por %p33, %p34
      %p36 = scmp.ne.s32.totalorder %s25, %s28
      %p37 = scmp.eq.s32.totalorder %s20, 1
      %p38 = por %p36, %p37
      %p39 = scmp.ne.s32.totalorder %s28, %s29
      %p40 = scmp.eq.s32.totalorder %s20, 0
      %p41 = por %p39, %p40
      %p42 = scmp.ne.s32.totalorder %s28, %s29
      %p43 = scmp.eq.s32.totalorder %s21, 1
      %p44 = por %p42, %p43
      %p46 = scmp.ne.s32.totalorder %s29, %s45
      %p47 = scmp.eq.s32.totalorder %s21, 0
      %p48 = por %p46, %p47
      %s50 = sadd.s32 %s49, 1
      %p53 = scmp.eq.s32.totalorder %s15, 1
      %p54 = scmp.ne.s32.totalorder %s49, %s51
      %p55 = scmp.eq.s32.totalorder %s15, 0
      %p56 = por %p54, %p55
      %p57 = scmp.ne.s32.totalorder %s49, %s51
      %p58 = scmp.eq.s32.totalorder %s20, 1
      %p59 = por %p57, %p58
      %p60 = scmp.ne.s32.totalorder %s51, %s52
      %p61 = scmp.eq.s32.totalorder %s20, 0
      %p62 = por %p60, %p61
      %p63 = scmp.ne.s32.totalorder %s51, %s52
      %p64 = scmp.eq.s32.totalorder %s21, 1
      %p65 = por %p63, %p64
      %p67 = scmp.ne.s32.totalorder %s52, %s66
      %p68 = scmp.eq.s32.totalorder %s21, 0
      %p69 = por %p67, %p68
      %s70 = ssub.s32 %s15, %s22
      %p71 = scmp.eq.s32.totalorder %s70, 0
      %s73 = sadd.s32 %s72, 1
      %s74 = scalar_select %p71, %s72, %s73
      %p77 = pneg %p71
      %p78 = scmp.eq.s32.totalorder %s15, 1
      %p79 = por %p77, %p78
      %p80 = scmp.ne.s32.totalorder %s72, %s75
      %p81 = scmp.eq.s32.totalorder %s15, 0
      %p82 = por %p80, %p81
      %p83 = scmp.ne.s32.totalorder %s72, %s75
      %p84 = scmp.eq.s32.totalorder %s20, 1
      %p85 = por %p83, %p84
      %p86 = scmp.ne.s32.totalorder %s75, %s76
      %p87 = scmp.eq.s32.totalorder %s20, 0
      %p88 = por %p86, %p87
      %p89 = scmp.ne.s32.totalorder %s75, %s76
      %p90 = scmp.eq.s32.totalorder %s21, 1
      %p91 = por %p89, %p90
      %p93 = scmp.ne.s32.totalorder %s76, %s92
      %p94 = scmp.eq.s32.totalorder %s21, 0
      %p95 = por %p93, %p94
      %p96 = scmp.le.s32.totalorder 1, %s15
      %p97 = scmp.lt.s32.totalorder %s15, 3
      %p98 = pnand %p96, %p97
      %p99 = pneg %p98
      // Predicated region
      $region9: #{tpu_custom_call.1} parent=5 // pred_check
        _
      $region10: #{tpu_custom_call.1} parent=5 // pred_check_branch
        %101 = sbr.rel (%p98) target = $region12
      $region11: #{tpu_custom_call.1} parent=5 // pred_region
        %s102 = ssub.s32 %s15, 1
        // Predicated region
        $region13: #{tpu_custom_call.1} parent=11 // pred_check
          %p103 = pneg %p62
        $region14: #{tpu_custom_call.1} parent=11 // pred_check_branch
          %105 = sbr.rel (%p103) target = $region16
        $region15: #{tpu_custom_call.1} parent=11 // pred_region
          %107 = vsyncadd [#allocation6], 0
          %s108 = sshll.u32 %s1, 4
          %s109 = int_to_ptr.hbm [resolvable:$true] %s108
          %s110 = sshll.u32 [#allocation5], 4
          %s111 = int_to_ptr.vmem [resolvable:$true] %s110
          %116 = dma.hbm_to_vmem [thread:$0]  %s109, 2048, %s111, [#allocation6], 128, 128, 8
        $region16: #{tpu_custom_call.1} parent=11 // pred_fallthru
          _
      $region12: #{tpu_custom_call.1} parent=5 // pred_fallthru
        _
      %p117 = scmp.lt.s32.totalorder %s15, 2
      // Predicated region
      $region17: #{tpu_custom_call.1} parent=5 // pred_check
        %p118 = pneg %p117
      $region18: #{tpu_custom_call.1} parent=5 // pred_check_branch
        %120 = sbr.rel (%p118) target = $region20
      $region19: #{tpu_custom_call.1} parent=5 // pred_region
        // Predicated region
        $region21: #{tpu_custom_call.1} parent=19 // pred_check
          %p121 = pneg %p35
        $region22: #{tpu_custom_call.1} parent=19 // pred_check_branch
          %123 = sbr.rel (%p121) target = $region24
        $region23: #{tpu_custom_call.1} parent=19 // pred_region
          %s124 = sand.u32 %s25, 1
          %s125 = scalar_lea.sflag [#allocation3], %s124
          %s126 = sand.u32 %s25, 1
          %s127 = smul.addr %s126, 8
          %s128 = scalar_lea.vmem [#allocation2], %s127
          %130 = vsyncadd %s125, 0
          %s131 = smul.addr %s15, 8
          %s132 = scalar_lea.hbm %s0, %s131
          %s134 = sshll.u32 %s132, 4
          %s135 = int_to_ptr.hbm [resolvable:$true] %s134
          %s136 = sshll.u32 %s128, 4
          %s137 = int_to_ptr.vmem [resolvable:$true] %s136
          %139 = dma.hbm_to_vmem [thread:$0]  %s135, 128, %s137, %s125
        $region24: #{tpu_custom_call.1} parent=19 // pred_fallthru
          _
      $region20: #{tpu_custom_call.1} parent=5 // pred_fallthru
        _
      %p140 = scmp.le.s32.totalorder 1, %s15
      %p141 = scmp.lt.s32.totalorder %s15, 3
      %p142 = pnand %p140, %p141
      %p143 = pneg %p142
      // Predicated region
      $region25: #{tpu_custom_call.1} parent=5 // pred_check
        _
      $region26: #{tpu_custom_call.1} parent=5 // pred_check_branch
        %145 = sbr.rel (%p142) target = $region28
      $region27: #{tpu_custom_call.1} parent=5 // pred_region
        %s146 = ssub.s32 %s15, 1
        %s147 = sand.u32 %s28, 1
        %s148 = scalar_lea.sflag [#allocation3], %s147
        %s149 = sand.u32 %s28, 1
        %s150 = smul.addr %s149, 8
        %s151 = scalar_lea.vmem [#allocation2], %s150
        // Predicated region
        $region29: #{tpu_custom_call.1} parent=27 // pred_check
          %p152 = pneg %p41
        $region30: #{tpu_custom_call.1} parent=27 // pred_check_branch
          %154 = sbr.rel (%p152) target = $region32
        $region31: #{tpu_custom_call.1} parent=27 // pred_region
          %156 = dma.done %s148, 128
        $region32: #{tpu_custom_call.1} parent=27 // pred_fallthru
          _
        // Predicated region
        $region33: #{tpu_custom_call.1} parent=27 // pred_check
          %p157 = pneg %p62
        $region34: #{tpu_custom_call.1} parent=27 // pred_check_branch
          %159 = sbr.rel (%p157) target = $region36
        $region35: #{tpu_custom_call.1} parent=27 // pred_region
          %161 = dma.done [#allocation6], 2048
        $region36: #{tpu_custom_call.1} parent=27 // pred_fallthru
          _
        %s162 = sand.u32 %s28, 1
        %s163 = scalar_lea.sflag [#allocation3], %s162
        %s164 = sand.u32 %s28, 1
        %s165 = smul.addr %s164, 8
        %s166 = scalar_lea.vmem [#allocation2], %s165
        %p167 = pneg %p41
        %p168 = pneg %p38
        %p169 = pneg %p62
        %p170 = pneg %p59
        %p171 = pneg %p88
        %p172 = pneg %p85
        %s173 = sand.u32 %s75, 1
        %s174 = scalar_lea.sflag [#allocation4], %s173
        %s175 = sand.u32 %s75, 1
        %s176 = smul.addr %s175, 8
        %s177 = scalar_lea.vmem [#allocation7], %s176
        %v178 = vld [vmem:[%s151] sm:$0xff]
        %v179 = vmul.f32 %v178, %v178
        %180 = vadd.xlane.f32.xlu0 %v179
        %v181 = vpop.xlane.xlu0 %180
        %v182 = vmax.f32 %v181, 1e-24
        %v183 = vrsqrt.pop %v182
        %v184 = vmul.f32 %v183, %v182
        %v185 = vmul.f32 %v184, %v183
        %v186 = vmul.f32 0.5, %v185
        %v187 = vsub.f32 1.5, %v186
        %v188 = vmul.f32 %v183, %v187
        %vm189 = vweird.f32 %v182
        %vm190 = vweird.f32 %v183
        %vm191 = vmor %vm189, %vm190
        %v192 = vsel %vm191, %v183, %v188
        %v193 = vmul.f32 %v178, %v192
        %v194 = vld [vmem:[#allocation5] sm:$0xff]
        %v195 = vld [vmem:[#allocation5 + $0x8] sm:$0xff]
        %v196 = vld [vmem:[#allocation5 + $0x10] sm:$0xff]
        %v197 = vld [vmem:[#allocation5 + $0x18] sm:$0xff]
        %v198 = vld [vmem:[#allocation5 + $0x20] sm:$0xff]
        %v199 = vld [vmem:[#allocation5 + $0x28] sm:$0xff]
        %v200 = vld [vmem:[#allocation5 + $0x30] sm:$0xff]
        %v201 = vld [vmem:[#allocation5 + $0x38] sm:$0xff]
        %v202 = vld [vmem:[#allocation5 + $0x40] sm:$0xff]
        %v203 = vld [vmem:[#allocation5 + $0x48] sm:$0xff]
        %v204 = vld [vmem:[#allocation5 + $0x50] sm:$0xff]
        %v205 = vld [vmem:[#allocation5 + $0x58] sm:$0xff]
        %v206 = vld [vmem:[#allocation5 + $0x60] sm:$0xff]
        %v207 = vld [vmem:[#allocation5 + $0x68] sm:$0xff]
        %v208 = vld [vmem:[#allocation5 + $0x70] sm:$0xff]
        %v209 = vld [vmem:[#allocation5 + $0x78] sm:$0xff]
        %210 = vmatpush.msra.mxu0 %v209
        %211 = vmatpush.msra.mxu0 %v208
        %212 = vmatpush.msra.mxu0 %v207
        %213 = vmatpush.msra.mxu0 %v206
        %214 = vmatpush.msra.mxu0 %v205
        %215 = vmatpush.msra.mxu0 %v204
        %216 = vmatpush.msra.mxu0 %v203
        %217 = vmatpush.msra.mxu0 %v202
        %218 = vmatpush.msra.mxu0 %v201
        %219 = vmatpush.msra.mxu0 %v200
        %220 = vmatpush.msra.mxu0 %v199
        %221 = vmatpush.msra.mxu0 %v198
        %222 = vmatpush.msra.mxu0 %v197
        %223 = vmatpush.msra.mxu0 %v196
        %224 = vmatpush.msra.mxu0 %v195
        %225 = vmatpush.msra.mxu0 %v194
        %226 = vmatmul.f32.gmra.mxu0 %v193
        %v227 = vpop.f32.mrf.mxu0
        %v228 = vadd.f32 0.0, %v227
        %229 = vdwg.mxu0
        %230 = vst [vmem:[%s177] sm:$0xff] %v228
        %s231 = sand.u32 %s75, 1
        %s232 = scalar_lea.sflag [#allocation4], %s231
        %s233 = sand.u32 %s75, 1
        %s234 = smul.addr %s233, 8
        %s235 = scalar_lea.vmem [#allocation7], %s234
        // Predicated region
        $region37: #{tpu_custom_call.1} parent=27 // pred_check
          %p236 = pneg %p85
        $region38: #{tpu_custom_call.1} parent=27 // pred_check_branch
          %238 = sbr.rel (%p236) target = $region40
        $region39: #{tpu_custom_call.1} parent=27 // pred_region
          %240 = vsyncadd %s232, 0
          %s241 = smul.addr %s20, 8
          %s242 = scalar_lea.hbm %s2, %s241
          %s244 = sshll.u32 %s235, 4
          %s245 = int_to_ptr.vmem [resolvable:$true] %s244
          %s246 = sshll.u32 %s242, 4
          %s247 = int_to_ptr.hbm [resolvable:$true] %s246
          %249 = dma.vmem_to_hbm [thread:$0]  %s245, 128, %s247, %s232
        $region40: #{tpu_custom_call.1} parent=27 // pred_fallthru
          _
      $region28: #{tpu_custom_call.1} parent=5 // pred_fallthru
        _
      %p250 = scmp.le.s32.totalorder 2, %s15
      // Predicated region
      $region41: #{tpu_custom_call.1} parent=5 // pred_check
        %p251 = pneg %p250
      $region42: #{tpu_custom_call.1} parent=5 // pred_check_branch
        %253 = sbr.rel (%p251) target = $region44
      $region43: #{tpu_custom_call.1} parent=5 // pred_region
        %s254 = ssub.s32 %s15, 2
        // Predicated region
        $region45: #{tpu_custom_call.1} parent=43 // pred_check
          %p255 = pneg %p91
        $region46: #{tpu_custom_call.1} parent=43 // pred_check_branch
          %257 = sbr.rel (%p255) target = $region48
        $region47: #{tpu_custom_call.1} parent=43 // pred_region
          %s258 = sand.u32 %s76, 1
          %s259 = scalar_lea.sflag [#allocation4], %s258
          %s260 = sand.u32 %s76, 1
          %s261 = smul.addr %s260, 8
          %s262 = scalar_lea.vmem [#allocation7], %s261
          %264 = dma.done %s259, 128
        $region48: #{tpu_custom_call.1} parent=43 // pred_fallthru
          _
      $region44: #{tpu_custom_call.1} parent=5 // pred_fallthru
        _
    $region6: #{tpu_custom_call.1} parent=1 // loop_footer
      %s19 = sadd.s32 1, %s15
    $region7: #{tpu_custom_call.1} parent=1 // loop_footer_branch
      %14 = sbr.rel target = $region3
    $region8: #{tpu_custom_call.1} parent=1 // loop_exit
      _
    %265 = vsyncpa [#allocation3], 1
    %s266 = scalar_lea.sflag [#allocation3], 1
    %267 = vsyncpa %s266, 1
    %268 = vsyncpa [#allocation6], 1
    %269 = vsyncpa [#allocation4], 1
    %s270 = scalar_lea.sflag [#allocation4], 1
    %271 = vsyncpa %s270, 1

</llo_original>
